<compile_context>
chip_gen: v6e
topology: v6e:2x2x1
jax: 0.10.0
libtpu: 0.0.40
codegen_flags: <defaults>
</compile_context>

<pallas_src>
import jax
import jax.numpy as jnp
from jax import lax
from jax.experimental import pallas as pl
from jax.experimental.pallas import tpu as pltpu


def _round_up(x: int, m: int) -> int:
    return ((x + m - 1) // m) * m


def _sublane_multiple(dtype) -> int:
    # 8 rows for 32-bit, 16 for bf16, 32 for int8/fp8 (packed-sublane native tiles).
    bits = jnp.dtype(dtype).itemsize * 8
    return max(8, 256 // bits)


def _vmem_capacity_bytes() -> int:
    try:
        cap = int(pltpu.get_tpu_info().vmem_capacity_bytes)
        if cap > 0:
            return cap
    except Exception:
        pass
    return 64 << 20  # conservative fallback (v7x per-TC VMEM)


def _projector_kernel(x_ref, w_ref, b_ref, o_ref):
    # x_ref: (tm, H) activations; w_ref: (tn|P, H) weight in torch layout;
    # b_ref: (1, tn|P) f32 bias; o_ref: (tm, tn|P) output tile.
    acc = lax.dot_general(
        x_ref[...], w_ref[...],
        dimension_numbers=(((1,), (1,)), ((), ())),   # x @ w.T on the MXU
        preferred_element_type=jnp.float32,            # f32 accumulation (nn.Linear)
    )
    o_ref[...] = (acc + b_ref[...]).astype(o_ref.dtype)


def revision_multimodal_projector(image_features, weight, bias, *,
                                  tm=512, tn=1024, operand_dtype=None):
    """image_features: (B, S, H); weight: (P, H) [torch Linear layout]; bias: (P,)."""
    B, S, H = image_features.shape
    P, Hw = weight.shape
    assert Hw == H, "weight hidden dim mismatch"
    out_dtype = image_features.dtype
    M = B * S
    if M == 0:  # empty batch guard
        return jnp.zeros((B, S, P), dtype=out_dtype)

    x2d = image_features.reshape(M, H)
    w = weight
    if operand_dtype is not None:        # optional bf16 operands (numerics-affecting)
        x2d = x2d.astype(operand_dtype)
        w = w.astype(operand_dtype)
    b = bias.astype(jnp.float32)         # pre-cast once; added to f32 accumulator

    x_item = jnp.dtype(x2d.dtype).itemsize
    w_item = jnp.dtype(w.dtype).itemsize
    o_item = jnp.dtype(out_dtype).itemsize
    sub = max(_sublane_multiple(x2d.dtype), _sublane_multiple(out_dtype))

    # Generation-aware VMEM budget: ~48 MiB on v7x (64 MiB/TC), ~96-100 MiB on v5e/v6e.
    cap = _vmem_capacity_bytes()
    budget = int(min(cap * 3 // 4, 100 << 20))

    # ----- M tiling: sublane-aligned, minimise dead-row padding -----
    tm_target = max(sub, (min(tm, _round_up(M, sub)) // sub) * sub)
    if M <= tm_target:
        tm_eff = _round_up(M, sub)
        M_pad = tm_eff
    else:
        best_tm = tm_target
        best_pad = pl.cdiv(M, tm_target) * tm_target - M
        cand = tm_target - sub
        low = max(sub, tm_target // 2)
        while cand >= low and best_pad > 0:
            pad = pl.cdiv(M, cand) * cand - M
            if pad < best_pad:
                best_tm, best_pad = cand, pad
            cand -= sub
        tm_eff = best_tm
        M_pad = pl.cdiv(M, tm_eff) * tm_eff
    m_tiles = M_pad // tm_eff

    # Keep both v7x TensorCores busy: ensure >= 2 grid steps on the parallel M axis.
    if m_tiles < 2 and M_pad >= 2 * sub:
        tm_eff = _round_up(pl.cdiv(M_pad, 2), sub)
        M_pad = pl.cdiv(M, tm_eff) * tm_eff
        m_tiles = M_pad // tm_eff

    # ----- weight residency decision -----
    w_bytes = P * H * w_item
    resident = (2 * w_bytes) <= min(budget // 2, 32 << 20)

    if resident:
        # Whole weight + bias live in VMEM; fetched from HBM once for the whole call.
        vmem_need = (2 * (tm_eff * H * x_item + tm_eff * P * o_item)
                     + 2 * (w_bytes + P * 4))
        while vmem_need > budget and tm_eff > sub:
            tm_eff = max(sub, ((tm_eff // 2) // sub) * sub)
            M_pad = pl.cdiv(M, tm_eff) * tm_eff
            m_tiles = M_pad // tm_eff
            vmem_need = (2 * (tm_eff * H * x_item + tm_eff * P * o_item)
                         + 2 * (w_bytes + P * 4))
        P_pad = P
        b2d = b.reshape(1, P)
        grid = (m_tiles,)
        in_specs = [
            pl.BlockSpec((tm_eff, H), lambda i: (i, 0)),   # streamed activation rows
            pl.BlockSpec((P, H), lambda i: (0, 0)),        # resident weight (torch layout)
            pl.BlockSpec((1, P), lambda i: (0, 0)),        # resident f32 bias
        ]
        out_specs = pl.BlockSpec((tm_eff, P), lambda i: (i, 0))
        dim_sem = ("parallel",)
        hbm_bytes = M_pad * H * x_item + w_bytes + P * 4 + M_pad * P * o_item
    else:
        # Streamed weight: pick a 128-multiple tn that divides P exactly (no weight pad)
        tn_cap = max(128, min(tn, _round_up(P, 128)))
        tn_eff = None
        t = 128
        while t <= min(P, tn_cap):
            if P % t == 0:
                tn_eff = t
            t += 128
        if tn_eff is None:
            tn_eff = tn_cap  # rare: P not a multiple of 128 -> pad weight below

        def _need(tm_, tn_):
            return 2 * (tm_ * H * x_item + tn_ * H * w_item
                        + tm_ * tn_ * o_item + tn_ * 4)

        # Shrink tiles if a double-buffered step would blow the VMEM budget.
        while _need(tm_eff, tn_eff) > budget and (tm_eff > sub or tn_eff > 128):
            if tn_eff > 128 and tn_eff * w_item >= tm_eff * x_item:
                tn_eff = max(128, ((tn_eff // 2) // 128) * 128)
            elif tm_eff > sub:
                tm_eff = max(sub, ((tm_eff // 2) // sub) * sub)
            else:
                break
        M_pad = pl.cdiv(M, tm_eff) * tm_eff
        m_tiles = M_pad // tm_eff
        vmem_need = _need(tm_eff, tn_eff)

        P_pad = pl.cdiv(P, tn_eff) * tn_eff
        if P_pad != P:
            w = jnp.pad(w, ((0, P_pad - P), (0, 0)))
            b = jnp.pad(b, (0, P_pad - P))
        b2d = b.reshape(1, P_pad)
        p_tiles = P_pad // tn_eff

        # Grid order minimising re-fetched HBM traffic (inner axis = constant operand).
        traffic_m_outer = M_pad * H * x_item + m_tiles * P_pad * H * w_item
        traffic_p_outer = p_tiles * M_pad * H * x_item + P_pad * H * w_item
        if traffic_m_outer <= traffic_p_outer:
            grid = (m_tiles, p_tiles)
            in_specs = [
                pl.BlockSpec((tm_eff, H), lambda i, j: (i, 0)),
                pl.BlockSpec((tn_eff, H), lambda i, j: (j, 0)),
                pl.BlockSpec((1, tn_eff), lambda i, j: (0, j)),
            ]
            out_specs = pl.BlockSpec((tm_eff, tn_eff), lambda i, j: (i, j))
            hbm_bytes = traffic_m_outer
        else:
            grid = (p_tiles, m_tiles)
            in_specs = [
                pl.BlockSpec((tm_eff, H), lambda j, i: (i, 0)),
                pl.BlockSpec((tn_eff, H), lambda j, i: (j, 0)),
                pl.BlockSpec((1, tn_eff), lambda j, i: (0, j)),
            ]
            out_specs = pl.BlockSpec((tm_eff, tn_eff), lambda j, i: (i, j))
            hbm_bytes = traffic_p_outer
        hbm_bytes += P_pad * 4 + M_pad * P_pad * o_item
        dim_sem = ("parallel", "parallel")

    # Pad ragged M (sliced off after the call).
    if M_pad != M:
        x2d = jnp.pad(x2d, ((0, M_pad - M), (0, 0)))

    vmem_limit = int(min(max(vmem_need + (4 << 20), 16 << 20), budget))

    cost = pl.CostEstimate(
        flops=2 * M_pad * H * P_pad,
        transcendentals=0,
        bytes_accessed=int(hbm_bytes),
    )

    out2d = pl.pallas_call(
        _projector_kernel,
        out_shape=jax.ShapeDtypeStruct((M_pad, P_pad), out_dtype),
        grid_spec=pltpu.PrefetchScalarGridSpec(
            num_scalar_prefetch=0,
            grid=grid,
            in_specs=in_specs,
            out_specs=out_specs,
        ),
        compiler_params=pltpu.CompilerParams(
            dimension_semantics=dim_sem,
            vmem_limit_bytes=vmem_limit,
        ),
        cost_estimate=cost,
    )(x2d, w, b2d)

    return out2d[:M, :P].reshape(B, S, P)


def reference(image_features, weight, bias):
    # Pure-JAX reference matching torch.nn.Linear semantics: x @ W^T + b.
    return jnp.einsum("bsh,ph->bsp", image_features, weight) + bias


if __name__ == "__main__":
    # Small, module-consistent shapes:
    #   vision_config.hidden_size    = 32
    #   vision_config.projection_dim = 64
    batch, seq, hidden, proj = 2, 8, 32, 64

    key = jax.random.PRNGKey(0)
    k_x, k_w, k_b = jax.random.split(key, 3)

    image_features = jax.random.normal(k_x, (batch, seq, hidden), dtype=jnp.float32)
    # Deterministic synthetic Linear parameters (torch layout: weight (P, H), bias (P,)).
    weight = jax.random.normal(k_w, (proj, hidden), dtype=jnp.float32) * 0.02
    bias = jax.random.normal(k_b, (proj,), dtype=jnp.float32) * 0.01

    out = revision_multimodal_projector(image_features, weight, bias)
    out = jax.block_until_ready(out)

    ref = reference(image_features, weight, bias)
    assert out.shape == (batch, seq, proj)
    assert jnp.allclose(out, ref, atol=1e-5, rtol=1e-5), "mismatch vs reference"

    print("KERNEL_OK")
</pallas_src>

<mosaic_0001>
module attributes {stable_mosaic.version = 11 : i64} {
  func.func @_projector_kernel(%arg0: i32, %arg1: memref<8x32xf32, #tpu.memory_space<vmem>>, %arg2: memref<64x32xf32, #tpu.memory_space<vmem>>, %arg3: memref<1x64xf32, #tpu.memory_space<vmem>>, %arg4: memref<8x64xf32, #tpu.memory_space<vmem>>) attributes {dimension_semantics = [#tpu.dimension_semantics<parallel>], iteration_bounds = array<i64: 2>, scalar_prefetch = 0 : i64, scratch_operands = 0 : i64, tpu.core_type = #tpu.core_type<tc>, window_params = [{transform_indices = @transform_0, window_bounds = array<i64: 8, 32>}, {pipeline_mode = #tpu.pipeline_mode<synchronous>, transform_indices = @transform_1, window_bounds = array<i64: 64, 32>}, {pipeline_mode = #tpu.pipeline_mode<synchronous>, transform_indices = @transform_2, window_bounds = array<i64: 1, 64>}, {transform_indices = @transform_3, window_bounds = array<i64: 8, 64>}]} {
    %c0 = arith.constant 0 : index
    %c0_0 = arith.constant 0 : index
    %0 = vector.load %arg1[%c0, %c0_0] : memref<8x32xf32, #tpu.memory_space<vmem>>, vector<8x32xf32>
    %c0_1 = arith.constant 0 : index
    %c0_2 = arith.constant 0 : index
    %1 = vector.load %arg2[%c0_1, %c0_2] : memref<64x32xf32, #tpu.memory_space<vmem>>, vector<64x32xf32>
    %cst = arith.constant dense<0.000000e+00> : vector<8x64xf32>
    %2 = tpu.matmul %0, %1, %cst {dimension_numbers = #tpu.dot_dimension_numbers<[1], [1], [0], [0], [0, 0, 1, 0], [], []>} : vector<8x32xf32>, vector<64x32xf32>, vector<8x64xf32> -> vector<8x64xf32>
    %c0_3 = arith.constant 0 : index
    %c0_4 = arith.constant 0 : index
    %3 = vector.load %arg3[%c0_3, %c0_4] : memref<1x64xf32, #tpu.memory_space<vmem>>, vector<1x64xf32>
    %4 = vector.broadcast %3 : vector<1x64xf32> to vector<8x64xf32>
    %5 = arith.addf %2, %4 : vector<8x64xf32>
    %c0_5 = arith.constant 0 : index
    %c0_6 = arith.constant 0 : index
    %6 = vector.load %arg4[%c0_5, %c0_6] : memref<8x64xf32, #tpu.memory_space<vmem>>, vector<8x64xf32>
    tpu.vector_store %arg4[%c0_5, %c0_6], %5 {strides = array<i32>} : memref<8x64xf32, #tpu.memory_space<vmem>>, vector<8x64xf32>,
    return
  }
  func.func @transform_0(%arg0: i32) -> (i32, i32) {
    %c0_i32 = arith.constant 0 : i32
    %c0_i32_0 = arith.constant 0 : i32
    return %arg0, %c0_i32 : i32, i32
  }
  func.func @transform_1(%arg0: i32) -> (i32, i32) {
    %c0_i32 = arith.constant 0 : i32
    %c0_i32_0 = arith.constant 0 : i32
    %c0_i32_1 = arith.constant 0 : i32
    return %c0_i32, %c0_i32_0 : i32, i32
  }
  func.func @transform_2(%arg0: i32) -> (i32, i32) {
    %c0_i32 = arith.constant 0 : i32
    %c0_i32_0 = arith.constant 0 : i32
    %c0_i32_1 = arith.constant 0 : i32
    return %c0_i32, %c0_i32_0 : i32, i32
  }
  func.func @transform_3(%arg0: i32) -> (i32, i32) {
    %c0_i32 = arith.constant 0 : i32
    %c0_i32_0 = arith.constant 0 : i32
    return %arg0, %c0_i32 : i32, i32
  }
}

</mosaic_0001>

<llo_original>
// kernel: tpu_custom_call.1
$region0: #{tpu_custom_call.1}
  #allocation0 [shape = 'u32[]', space=smem, size = 0x4, offset = 0x4, fixed_abs, tag = 'smem constant byte address 0x4 - core index']
  #allocation1 [shape = 'u32[144,128]{1,0:T(1,128)}', space=vmem, size = 0x12000, scoped, tag = 'internal scratch']
  %s0 = inlined_call_operand.vmem [shape: f32[16,32], index: 0, kind: input, shape index: {}]
  %s1 = inlined_call_operand.vmem [shape: f32[64,32], index: 1, kind: input, shape index: {}]
  %s2 = inlined_call_operand.vmem [shape: f32[1,64], index: 2, kind: input, shape index: {}]
  %s3 = inlined_call_operand.hbm [shape: f32[16,64], index: 3, kind: output, shape index: {}]
  %s4 = sld [smem:[#allocation0]]
  $region45: #{tpu_custom_call.1} parent=0
    _
  %s6 = ssub.s32 1, %s4
  %s7 = scalar_select 0, %s6, %s4
  $region1: #{tpu_custom_call.1} parent=0
    #allocation2 [shape = 'u8[8192]{0}', space=vmem, size = 0x2000, scoped, tag = 'output window, operand 0']
    #allocation3 [shape = 's32[2]{0}', space=sflag, size = 0x8, scoped, tag = 'scoped memory for tpu_custom_call.1']
    %8 = vsyncpa [#allocation3], 0
    %s9 = scalar_lea.sflag [#allocation3], 1
    %10 = vsyncpa %s9, 0
    loop: start=0, step=1, limit=4
    $region2: #{tpu_custom_call.1} parent=1 // loop_pre_header
      _
    $region3: #{tpu_custom_call.1} parent=1 // loop_header
      %s12 = sphi 0, %s16
      %p13 = scmp.ge.s32.totalorder %s12, 4
      %s22 = sphi 0, %s24
      %s25 = sphi 0, %s22
      %s26 = sphi 0, %s25
      %s42 = sphi 0, %s26
      %s46 = sphi 0, %s46
      %s48 = sphi 0, %s46
      %s49 = sphi 0, %s48
      %s63 = sphi 0, %s49
      %s67 = sphi 0, %s67
      %s69 = sphi 0, %s67
      %s70 = sphi 0, %s69
      %s84 = sphi 0, %s70
      %s90 = sphi 0, %s92
      %s93 = sphi 0, %s90
      %s94 = sphi 0, %s93
      %s110 = sphi 0, %s94
    $region4: #{tpu_custom_call.1} parent=1 // loop_header_branch
      %15 = sbr.rel (%p13) target = $region8
    $region5: #{tpu_custom_call.1} parent=1 // loop_body
      %s17 = ssub.s32 %s12, 1
      %s18 = ssub.s32 %s12, 2
      %s19 = sadd.s32 %s12, 1
      %s20 = ssub.s32 %s12, %s19
      %p21 = scmp.eq.s32.totalorder %s20, 0
      %s23 = sadd.s32 %s22, 1
      %s24 = scalar_select %p21, %s22, %s23
      %p27 = pneg %p21
      %p28 = scmp.eq.s32.totalorder %s12, 1
      %p29 = por %p27, %p28
      %p30 = scmp.ne.s32.totalorder %s22, %s25
      %p31 = scmp.eq.s32.totalorder %s12, 0
      %p32 = por %p30, %p31
      %p33 = scmp.ne.s32.totalorder %s22, %s25
      %p34 = scmp.eq.s32.totalorder %s17, 1
      %p35 = por %p33, %p34
      %p36 = scmp.ne.s32.totalorder %s25, %s26
      %p37 = scmp.eq.s32.totalorder %s17, 0
      %p38 = por %p36, %p37
      %p39 = scmp.ne.s32.totalorder %s25, %s26
      %p40 = scmp.eq.s32.totalorder %s18, 1
      %p41 = por %p39, %p40
      %p43 = scmp.ne.s32.totalorder %s26, %s42
      %p44 = scmp.eq.s32.totalorder %s18, 0
      %p45 = por %p43, %p44
      %s47 = sadd.s32 %s46, 1
      %p50 = scmp.eq.s32.totalorder %s12, 1
      %p51 = scmp.ne.s32.totalorder %s46, %s48
      %p52 = scmp.eq.s32.totalorder %s12, 0
      %p53 = por %p51, %p52
      %p54 = scmp.ne.s32.totalorder %s46, %s48
      %p55 = scmp.eq.s32.totalorder %s17, 1
      %p56 = por %p54, %p55
      %p57 = scmp.ne.s32.totalorder %s48, %s49
      %p58 = scmp.eq.s32.totalorder %s17, 0
      %p59 = por %p57, %p58
      %p60 = scmp.ne.s32.totalorder %s48, %s49
      %p61 = scmp.eq.s32.totalorder %s18, 1
      %p62 = por %p60, %p61
      %p64 = scmp.ne.s32.totalorder %s49, %s63
      %p65 = scmp.eq.s32.totalorder %s18, 0
      %p66 = por %p64, %p65
      %s68 = sadd.s32 %s67, 1
      %p71 = scmp.eq.s32.totalorder %s12, 1
      %p72 = scmp.ne.s32.totalorder %s67, %s69
      %p73 = scmp.eq.s32.totalorder %s12, 0
      %p74 = por %p72, %p73
      %p75 = scmp.ne.s32.totalorder %s67, %s69
      %p76 = scmp.eq.s32.totalorder %s17, 1
      %p77 = por %p75, %p76
      %p78 = scmp.ne.s32.totalorder %s69, %s70
      %p79 = scmp.eq.s32.totalorder %s17, 0
      %p80 = por %p78, %p79
      %p81 = scmp.ne.s32.totalorder %s69, %s70
      %p82 = scmp.eq.s32.totalorder %s18, 1
      %p83 = por %p81, %p82
      %p85 = scmp.ne.s32.totalorder %s70, %s84
      %p86 = scmp.eq.s32.totalorder %s18, 0
      %p87 = por %p85, %p86
      %s88 = ssub.s32 %s12, %s19
      %p89 = scmp.eq.s32.totalorder %s88, 0
      %s91 = sadd.s32 %s90, 1
      %s92 = scalar_select %p89, %s90, %s91
      %p95 = pneg %p89
      %p96 = scmp.eq.s32.totalorder %s12, 1
      %p97 = por %p95, %p96
      %p98 = scmp.ne.s32.totalorder %s90, %s93
      %p99 = scmp.eq.s32.totalorder %s12, 0
      %p100 = por %p98, %p99
      %p101 = scmp.ne.s32.totalorder %s90, %s93
      %p102 = scmp.eq.s32.totalorder %s17, 1
      %p103 = por %p101, %p102
      %p104 = scmp.ne.s32.totalorder %s93, %s94
      %p105 = scmp.eq.s32.totalorder %s17, 0
      %p106 = por %p104, %p105
      %p107 = scmp.ne.s32.totalorder %s93, %s94
      %p108 = scmp.eq.s32.totalorder %s18, 1
      %p109 = por %p107, %p108
      %p111 = scmp.ne.s32.totalorder %s94, %s110
      %p112 = scmp.eq.s32.totalorder %s18, 0
      %p113 = por %p111, %p112
      %p114 = scmp.le.s32.totalorder 1, %s12
      %p115 = scmp.lt.s32.totalorder %s12, 3
      %p116 = pnand %p114, %p115
      %p117 = pneg %p116
      // Predicated region
      $region9: #{tpu_custom_call.1} parent=5 // pred_check
        _
      $region10: #{tpu_custom_call.1} parent=5 // pred_check_branch
        %119 = sbr.rel (%p116) target = $region12
      $region11: #{tpu_custom_call.1} parent=5 // pred_region
        %s120 = ssub.s32 %s12, 1
        // Predicated region
        $region13: #{tpu_custom_call.1} parent=11 // pred_check
          %p121 = pneg %p59
        $region14: #{tpu_custom_call.1} parent=11 // pred_check_branch
          %123 = sbr.rel (%p121) target = $region16
        $region15: #{tpu_custom_call.1} parent=11 // pred_region
          _
        $region16: #{tpu_custom_call.1} parent=11 // pred_fallthru
          _
        // Predicated region
        $region17: #{tpu_custom_call.1} parent=11 // pred_check
          %p124 = pneg %p80
        $region18: #{tpu_custom_call.1} parent=11 // pred_check_branch
          %126 = sbr.rel (%p124) target = $region20
        $region19: #{tpu_custom_call.1} parent=11 // pred_region
          _
        $region20: #{tpu_custom_call.1} parent=11 // pred_fallthru
          _
      $region12: #{tpu_custom_call.1} parent=5 // pred_fallthru
        _
      %p127 = scmp.lt.s32.totalorder %s12, 2
      // Predicated region
      $region21: #{tpu_custom_call.1} parent=5 // pred_check
        %p128 = pneg %p127
      $region22: #{tpu_custom_call.1} parent=5 // pred_check_branch
        %130 = sbr.rel (%p128) target = $region24
      $region23: #{tpu_custom_call.1} parent=5 // pred_region
        // Predicated region
        $region25: #{tpu_custom_call.1} parent=23 // pred_check
          %p131 = pneg %p32
        $region26: #{tpu_custom_call.1} parent=23 // pred_check_branch
          %133 = sbr.rel (%p131) target = $region28
        $region27: #{tpu_custom_call.1} parent=23 // pred_region
          %p134 = scmp.lt.s32.totalorder %s12, 1
          %s135 = scalar_select %p134, %s12, 1
          %s136 = smul.addr %s135, 8
          %s137 = scalar_lea.vmem %s0, %s136
        $region28: #{tpu_custom_call.1} parent=23 // pred_fallthru
          _
      $region24: #{tpu_custom_call.1} parent=5 // pred_fallthru
        _
      %p138 = scmp.le.s32.totalorder 1, %s12
      %p139 = scmp.lt.s32.totalorder %s12, 3
      %p140 = pnand %p138, %p139
      %p141 = pneg %p140
      // Predicated region
      $region29: #{tpu_custom_call.1} parent=5 // pred_check
        _
      $region30: #{tpu_custom_call.1} parent=5 // pred_check_branch
        %143 = sbr.rel (%p140) target = $region32
      $region31: #{tpu_custom_call.1} parent=5 // pred_region
        %s144 = ssub.s32 %s12, 1
        %p145 = scmp.lt.s32.totalorder %s17, 1
        %s146 = scalar_select %p145, %s17, 1
        %s147 = smul.addr %s146, 8
        %s148 = scalar_lea.vmem %s0, %s147
        %p149 = pneg %p38
        %p150 = pneg %p35
        %p151 = pneg %p59
        %p152 = pneg %p56
        %p153 = pneg %p80
        %p154 = pneg %p77
        %p155 = pneg %p106
        %p156 = pneg %p103
        %s157 = sand.u32 %s93, 1
        %s158 = scalar_lea.sflag [#allocation3], %s157
        %s159 = sand.u32 %s93, 1
        %s160 = smul.addr %s159, 8
        %s161 = scalar_lea.vmem [#allocation2], %s160
        %p162 = scmp.lt.s32.totalorder %s17, 1
        %s163 = scalar_select %p162, %s17, 1
        %s164 = smul.addr %s163, 8
        %s165 = scalar_lea.vmem %s0, %s164
        %v166 = vld [vmem:[%s165] sm:$0xff]
        %v167 = vld [vmem:[%s1] sm:$0xff]
        %v168 = vld [vmem:[%s1 + $0x8] sm:$0xff]
        %v169 = vld [vmem:[%s1 + $0x10] sm:$0xff]
        %v170 = vld [vmem:[%s1 + $0x18] sm:$0xff]
        %v171 = vld [vmem:[%s1 + $0x20] sm:$0xff]
        %v172 = vld [vmem:[%s1 + $0x28] sm:$0xff]
        %v173 = vld [vmem:[%s1 + $0x30] sm:$0xff]
        %v174 = vld [vmem:[%s1 + $0x38] sm:$0xff]
        %v175 = vld [vmem:[%s2] sm:$0x1]
        %v177 = vlaneseq
        %v178 = vshrl.u32 %v177, 7
        %v179 = vsub.s32 0, %v178
        %v180 = vrot.slane %v175, %v179
        %vm182 = vcmask 261120
        %v184 = vsel %vm182, %v166, 0
        %v187 = vsel %vm182, %v167, 0
        %v190 = vsel %vm182, %v168, 0
        %v193 = vsel %vm182, %v169, 0
        %v196 = vsel %vm182, %v170, 0
        %v199 = vsel %vm182, %v171, 0
        %v202 = vsel %vm182, %v172, 0
        %v205 = vsel %vm182, %v173, 0
        %v208 = vsel %vm182, %v174, 0
        %210 = vmatprep.subr.mxu0 0.0
        %211 = vmatpush1.xpose.msra.mxu0 0.0
        %212 = vmatprep.subr.mxu0 0.0
        %213 = vmatpush1.xpose.msra.mxu0 0.0
        %214 = vmatprep.subr.mxu0 0.0
        %215 = vmatpush1.xpose.msra.mxu0 0.0
        %216 = vmatprep.subr.mxu0 0.0
        %217 = vmatpush1.xpose.msra.mxu0 0.0
        %218 = vmatprep.subr.mxu0 0.0
        %219 = vmatpush1.xpose.msra.mxu0 0.0
        %220 = vmatprep.subr.mxu0 0.0
        %221 = vmatpush1.xpose.msra.mxu0 0.0
        %222 = vmatprep.subr.mxu0 0.0
        %223 = vmatpush1.xpose.msra.mxu0 0.0
        %224 = vmatprep.subr.mxu0 0.0
        %225 = vmatpush1.xpose.msra.mxu0 0.0
        %226 = vmatprep.subr.mxu0 0.0
        %227 = vmatpush1.xpose.msra.mxu0 %v208
        %228 = vmatprep.subr.mxu0 0.0
        %229 = vmatpush1.xpose.msra.mxu0 %v205
        %230 = vmatprep.subr.mxu0 0.0
        %231 = vmatpush1.xpose.msra.mxu0 %v202
        %232 = vmatprep.subr.mxu0 0.0
        %233 = vmatpush1.xpose.msra.mxu0 %v199
        %234 = vmatprep.subr.mxu0 0.0
        %235 = vmatpush1.xpose.msra.mxu0 %v196
        %236 = vmatprep.subr.mxu0 0.0
        %237 = vmatpush1.xpose.msra.mxu0 %v193
        %238 = vmatprep.subr.mxu0 0.0
        %239 = vmatpush1.xpose.msra.mxu0 %v190
        %240 = vmatprep.subr.mxu0 0.0
        %241 = vmatpush1.xpose.msra.mxu0 %v187
        %242 = vmatprep.subr.mxu0 0.0
        %243 = vmatpush2.xpose.msra.mxu0 0.0
        %244 = vmatprep.subr.mxu0 0.0
        %245 = vmatpush2.xpose.msra.mxu0 0.0
        %246 = vmatprep.subr.mxu0 0.0
        %247 = vmatpush2.xpose.msra.mxu0 0.0
        %248 = vmatprep.subr.mxu0 0.0
        %249 = vmatpush2.xpose.msra.mxu0 0.0
        %250 = vmatprep.subr.mxu0 0.0
        %251 = vmatpush2.xpose.msra.mxu0 0.0
        %252 = vmatprep.subr.mxu0 0.0
        %253 = vmatpush2.xpose.msra.mxu0 0.0
        %254 = vmatprep.subr.mxu0 0.0
        %255 = vmatpush2.xpose.msra.mxu0 0.0
        %256 = vmatprep.subr.mxu0 0.0
        %257 = vmatpush2.xpose.msra.mxu0 0.0
        %258 = vmatprep.subr.mxu0 0.0
        %259 = vmatpush2.xpose.msra.mxu0 0.0
        %260 = vmatprep.subr.mxu0 0.0
        %261 = vmatpush2.xpose.msra.mxu0 0.0
        %262 = vmatprep.subr.mxu0 0.0
        %263 = vmatpush2.xpose.msra.mxu0 0.0
        %264 = vmatprep.subr.mxu0 0.0
        %265 = vmatpush2.xpose.msra.mxu0 0.0
        %266 = vmatprep.subr.mxu0 0.0
        %267 = vmatpush2.xpose.msra.mxu0 0.0
        %268 = vmatprep.subr.mxu0 0.0
        %269 = vmatpush2.xpose.msra.mxu0 0.0
        %270 = vmatprep.subr.mxu0 0.0
        %271 = vmatpush2.xpose.msra.mxu0 0.0
        %272 = vmatprep.subr.mxu0 0.0
        %273 = vmatpush2.xpose.msra.mxu0 0.0
        %274 = vmatprep.mubr.f32.mxu0 0.0
        %275 = vmatmul.mubr.f32.gmra.mxu0 %v184
        %v276 = vpop.f32.mrf.mxu0
        %v277 = vadd.f32 %v180, %v276
        %v278 = vpop.f32.mrf.mxu0
        %279 = vdwg.mxu0
        %vm280 = vcmask 523264
        %281 = vst.msk [vmem:[%s161] sm:$0xff] %vm280, %v277
        %s282 = sand.u32 %s93, 1
        %s283 = scalar_lea.sflag [#allocation3], %s282
        %s284 = sand.u32 %s93, 1
        %s285 = smul.addr %s284, 8
        %s286 = scalar_lea.vmem [#allocation2], %s285
        // Predicated region
        $region33: #{tpu_custom_call.1} parent=31 // pred_check
          %p287 = pneg %p103
        $region34: #{tpu_custom_call.1} parent=31 // pred_check_branch
          %289 = sbr.rel (%p287) target = $region36
        $region35: #{tpu_custom_call.1} parent=31 // pred_region
          %s291 = ssub.s32 128, 128
          %292 = vsyncadd %s283, %s291
          %s293 = smul.addr %s17, 128
          %s294 = scalar_lea.hbm %s3, %s293
          %s296 = sshll.u32 %s286, 4
          %s297 = int_to_ptr.vmem [resolvable:$true] %s296
          %299 = dma.vmem_to_hbm [thread:$0]  %s297, 128, %s294, %s283
        $region36: #{tpu_custom_call.1} parent=31 // pred_fallthru
          _
      $region32: #{tpu_custom_call.1} parent=5 // pred_fallthru
        _
      %p300 = scmp.le.s32.totalorder 2, %s12
      // Predicated region
      $region37: #{tpu_custom_call.1} parent=5 // pred_check
        %p301 = pneg %p300
      $region38: #{tpu_custom_call.1} parent=5 // pred_check_branch
        %303 = sbr.rel (%p301) target = $region40
      $region39: #{tpu_custom_call.1} parent=5 // pred_region
        %s304 = ssub.s32 %s12, 2
        // Predicated region
        $region41: #{tpu_custom_call.1} parent=39 // pred_check
          %p305 = pneg %p109
        $region42: #{tpu_custom_call.1} parent=39 // pred_check_branch
          %307 = sbr.rel (%p305) target = $region44
        $region43: #{tpu_custom_call.1} parent=39 // pred_region
          %s308 = sand.u32 %s94, 1
          %s309 = scalar_lea.sflag [#allocation3], %s308
          %s310 = sand.u32 %s94, 1
          %s311 = smul.addr %s310, 8
          %s312 = scalar_lea.vmem [#allocation2], %s311
          %313 = dma.done %s309, 128
        $region44: #{tpu_custom_call.1} parent=39 // pred_fallthru
          _
      $region40: #{tpu_custom_call.1} parent=5 // pred_fallthru
        _
    $region6: #{tpu_custom_call.1} parent=1 // loop_footer
      %s16 = sadd.s32 1, %s12
    $region7: #{tpu_custom_call.1} parent=1 // loop_footer_branch
      %11 = sbr.rel target = $region3
    $region8: #{tpu_custom_call.1} parent=1 // loop_exit
      _
    %314 = vsyncpa [#allocation3], 1
    %s315 = scalar_lea.sflag [#allocation3], 1
    %316 = vsyncpa %s315, 1

</llo_original>
